<compile_context>
chip_gen: v6e
topology: v6e:2x2x1
jax: 0.10.0
libtpu: 0.0.40
codegen_flags: <defaults>
</compile_context>

<pallas_src>
import functools
import math

import jax
import jax.numpy as jnp
import numpy as np
from jax.experimental import pallas as pl
from jax.experimental.pallas import tpu as pltpu


def _context_matching_kernel(s2_ref, w2_ref, l1_ref, l2_ref, out_ref, *,
                             block_t1, flat_out):
    # s2_ref : (Bb, T2, D)      keys/values for this batch block (input dtype)
    # w2_ref : (1, D)           second half of the Linear weight
    # l1_ref : (Bb, 1, 1) i32   valid query lengths
    # l2_ref : (Bb, 1, 1) i32   valid key lengths
    # out_ref: (Bb, 1, block_t1*D) if flat_out else (Bb, block_t1, D)
    ti = pl.program_id(1)
    bb, t2, d = s2_ref.shape

    s2 = s2_ref[...].astype(jnp.float32)               # (Bb, T2, D)
    w2 = w2_ref[...].astype(jnp.float32)                # (1, D)

    # Per-key scores, lane-dense (T2 on the lane axis): VPU multiply + lane
    # reduction instead of a width-1 MXU matmul.
    sb = jnp.sum(s2 * w2, axis=-1)                       # (Bb, T2)

    # Mask keys j >= l2; NaN-safe softmax over T2 (fully masked row -> zeros,
    # exactly reproducing masked_fill_(a_weight != a_weight, 0)).
    l2b = l2_ref[...].reshape(bb, 1)                     # (Bb, 1)
    col = jax.lax.broadcasted_iota(jnp.int32, (bb, t2), 1)
    valid = col < l2b                                    # (Bb, T2)
    sb = jnp.where(valid, sb, -jnp.inf)
    m = jnp.max(sb, axis=-1, keepdims=True)              # (Bb, 1)
    m = jnp.where(jnp.isfinite(m), m, 0.0)
    p = jnp.where(valid, jnp.exp(sb - m), 0.0)           # (Bb, T2)
    denom = jnp.sum(p, axis=-1, keepdims=True)           # (Bb, 1)
    a = p / jnp.where(denom > 0.0, denom, 1.0)           # (Bb, T2)

    # Single attended row per batch element: u_row[b,:] = sum_j a[b,j]*s2[b,j,:]
    u_row = jnp.sum(a[:, :, None] * s2, axis=1)          # (Bb, D) f32
    u_row = u_row.astype(out_ref.dtype)                  # cast once, pre-broadcast

    # Broadcast to valid query rows (i < l1), zero elsewhere — built directly
    # in the output dtype.  (Recomputing the O(T2*D) chain per T1 tile is cheap
    # and hides under the output writeback DMA.)
    l1b = l1_ref[...]                                    # (Bb, 1, 1)
    row = ti * block_t1 + jax.lax.broadcasted_iota(
        jnp.int32, (bb, block_t1, 1), 1)                 # (Bb, bT1, 1)
    zero = jnp.zeros((), out_ref.dtype)
    out = jnp.where(row < l1b, u_row[:, None, :], zero)  # (Bb, bT1, D)
    if flat_out:
        out = out.reshape(bb, 1, block_t1 * d)           # lane-dense store
    out_ref[...] = out


def _round_up(x, m):
    return ((x + m - 1) // m) * m


def _pick_tiles(B, T1, T2, D, in_isz, out_isz, flat_out):
    """Pick (block_b, block_t1, vmem_limit_bytes).

    Double-buffering-aware VMEM model, >= 2 grid steps whenever the shape
    allows (v7x megacore), and block_t1 quantized so blocked stores stay
    sublane/lane aligned (a whole dim is always a legal block)."""
    # block_t1 granularity: multiple of 8 (sublanes) that also keeps the
    # flattened lane width a multiple of 128.
    q = max(8, 128 // math.gcd(D, 128)) if flat_out else 8

    try:
        vmem_cap = int(pltpu.get_tpu_info().vmem_capacity_bytes)
    except Exception:
        vmem_cap = 64 * 1024 * 1024            # v7x-sized conservative default
    vmem_limit = min(vmem_cap // 2, 64 * 1024 * 1024)   # scoped limit requested
    budget = vmem_limit // 2                             # live-bytes target

    # Live-VMEM model per batch element in the block:
    #   s2 : 2 pipeline buffers (input dtype) + one f32 cast temporary
    #   out: 2 pipeline buffers + ~2 in-kernel temps (select result + relayout)
    s2_per_b = T2 * D * (2 * in_isz + 4)
    out_per_row = D * out_isz * 4

    cap_rows = max(q, (budget // 2) // max(out_per_row, 1))
    if T1 <= cap_rows:
        block_t1 = T1                           # whole dim: always legal
    else:
        block_t1 = max(q, (cap_rows // q) * q)

    per_b = s2_per_b + block_t1 * out_per_row
    block_b = int(max(1, min(B, budget // max(per_b, 1))))

    # Guarantee >= 2 grid steps along a "parallel" axis when possible so both
    # v7x TensorCores get work (harmless ~0.35us extra step on 1-TC chips).
    if pl.cdiv(B, block_b) * pl.cdiv(T1, block_t1) < 2:
        if B >= 2:
            block_b = pl.cdiv(B, 2)
        elif T1 > q:
            cand = _round_up(pl.cdiv(T1, 2), q)
            if cand < T1:
                block_t1 = cand

    est_live = block_b * (s2_per_b + block_t1 * out_per_row) + (1 << 20)
    vmem_limit = int(min(max(vmem_limit, est_live), vmem_cap * 7 // 8))
    return block_b, block_t1, vmem_limit


def context_matching(s1, s2, l1, l2, weight):
    """Pallas TPU forward of ContextMatching (mask2d=False).

    s1: (B, T1, D), s2: (B, T2, D), l1/l2: (B,) valid lengths,
    weight: (1, 2*D) = nn.Linear(2*D, 1, bias=False).weight.
    Returns u_tile: (B, T1, D).  s1 / weight[:, :D] provably cancel in the
    per-row softmax for this branch and are never loaded by the kernel.
    """
    B, T1, D = s1.shape
    _, T2, _ = s2.shape
    w2 = weight[:, D:]                                   # (1, D)
    out_dtype = s2.dtype

    # Lane-dense output: if D is not a multiple of 128, store a flattened
    # (B, 1, T1*D) slab and reshape back outside the kernel.
    flat_out = (D % 128) != 0

    in_isz = jnp.dtype(s2.dtype).itemsize
    out_isz = jnp.dtype(out_dtype).itemsize
    block_b, block_t1, vmem_limit = _pick_tiles(
        B, T1, T2, D, in_isz, out_isz, flat_out)
    grid = (pl.cdiv(B, block_b), pl.cdiv(T1, block_t1))

    l1_3d = l1.astype(jnp.int32).reshape(B, 1, 1)
    l2_3d = l2.astype(jnp.int32).reshape(B, 1, 1)

    in_specs = [
        pl.BlockSpec((block_b, T2, D), lambda bb, ti: (bb, 0, 0)),   # s2
        pl.BlockSpec((1, D),           lambda bb, ti: (0, 0)),       # w2
        pl.BlockSpec((block_b, 1, 1),  lambda bb, ti: (bb, 0, 0)),   # l1
        pl.BlockSpec((block_b, 1, 1),  lambda bb, ti: (bb, 0, 0)),   # l2
    ]
    compiler_params = pltpu.CompilerParams(
        dimension_semantics=("parallel", "parallel"),
        vmem_limit_bytes=vmem_limit)

    def run(flat):
        if flat:
            out_shape = jax.ShapeDtypeStruct((B, 1, T1 * D), out_dtype)
            out_specs = pl.BlockSpec((block_b, 1, block_t1 * D),
                                     lambda bb, ti: (bb, 0, ti))
        else:
            out_shape = jax.ShapeDtypeStruct((B, T1, D), out_dtype)
            out_specs = pl.BlockSpec((block_b, block_t1, D),
                                     lambda bb, ti: (bb, ti, 0))
        kernel = functools.partial(_context_matching_kernel,
                                   block_t1=block_t1, flat_out=flat)
        out = pl.pallas_call(
            kernel,
            out_shape=out_shape,
            grid=grid,
            in_specs=in_specs,
            out_specs=out_specs,
            compiler_params=compiler_params,
        )(s2, w2, l1_3d, l2_3d)
        return out.reshape(B, T1, D) if flat else out

    if not flat_out:
        return run(False)
    try:
        return run(True)
    except Exception:
        # Fallback if this Mosaic version rejects the (bT1, D)->(bT1*D) lane
        # flattening reshape: correct but uses masked (vst.msk) stores.
        return run(False)


def context_matching_ref(s1, s2, l1, l2, weight):
    """Pure-JAX reference mirroring the full PyTorch forward (mask2d=False)."""
    B, T1, D = s1.shape
    T2 = s2.shape[1]
    w1 = weight[:, :D]
    w2 = weight[:, D:]
    s = s1 @ w1.T + jnp.transpose(s2 @ w2.T, (0, 2, 1))    # (B, T1, T2)
    row = jnp.arange(T1)[None, :, None]
    col = jnp.arange(T2)[None, None, :]
    valid = (row < l1[:, None, None]) & (col < l2[:, None, None])
    s = jnp.where(valid, s, -jnp.inf)
    a = jax.nn.softmax(s, axis=2)
    a = jnp.where(jnp.isnan(a), 0.0, a)                    # masked_fill_(nan, 0)
    return jnp.einsum("bij,bjd->bid", a, s2)


if __name__ == "__main__":
    key = jax.random.PRNGKey(0)
    k1, k2, k3 = jax.random.split(key, 3)

    B, T1, T2, D = 3, 8, 8, 32            # Linear channel_size = 2*D = 64
    s1 = jax.random.normal(k1, (B, T1, D), dtype=jnp.float32)
    s2 = jax.random.normal(k2, (B, T2, D), dtype=jnp.float32)
    # Deterministic Linear(2D, 1, bias=False) weight (kaiming-uniform-like range).
    bound = 1.0 / np.sqrt(2 * D)
    weight = jax.random.uniform(k3, (1, 2 * D), dtype=jnp.float32,
                                minval=-bound, maxval=bound)
    # Valid lengths: partial/partial, full/partial, partial/fully-masked (l2=0).
    l1 = jnp.array([5, 8, 4], dtype=jnp.int32)
    l2 = jnp.array([6, 3, 0], dtype=jnp.int32)

    out = jax.block_until_ready(context_matching(s1, s2, l1, l2, weight))

    ref = context_matching_ref(s1, s2, l1, l2, weight)
    np.testing.assert_allclose(np.asarray(out), np.asarray(ref),
                               rtol=1e-5, atol=1e-5)

    print("KERNEL_OK")
</pallas_src>

<mosaic_0001>
module attributes {stable_mosaic.version = 11 : i64} {
  func.func @_context_matching_kernel(%arg0: i32, %arg1: i32, %arg2: memref<2x8x32xf32, #tpu.memory_space<vmem>>, %arg3: memref<1x32xf32, #tpu.memory_space<vmem>>, %arg4: memref<2x1x1xi32, #tpu.memory_space<vmem>>, %arg5: memref<2x1x1xi32, #tpu.memory_space<vmem>>, %arg6: memref<2x1x256xf32, #tpu.memory_space<vmem>>) attributes {dimension_semantics = [#tpu.dimension_semantics<parallel>, #tpu.dimension_semantics<parallel>], iteration_bounds = array<i64: 2, 1>, scalar_prefetch = 0 : i64, scratch_operands = 0 : i64, tpu.core_type = #tpu.core_type<tc>, window_params = [{transform_indices = @transform_0, window_bounds = array<i64: 2, 8, 32>}, {pipeline_mode = #tpu.pipeline_mode<synchronous>, transform_indices = @transform_1, window_bounds = array<i64: 1, 32>}, {transform_indices = @transform_2, window_bounds = array<i64: 2, 1, 1>}, {transform_indices = @transform_3, window_bounds = array<i64: 2, 1, 1>}, {transform_indices = @transform_4, window_bounds = array<i64: 2, 1, 256>}]} {
    %c0 = arith.constant 0 : index
    %c0_0 = arith.constant 0 : index
    %c0_1 = arith.constant 0 : index
    %0 = vector.load %arg2[%c0, %c0_0, %c0_1] : memref<2x8x32xf32, #tpu.memory_space<vmem>>, vector<2x8x32xf32>
    %c0_2 = arith.constant 0 : index
    %c0_3 = arith.constant 0 : index
    %1 = vector.load %arg3[%c0_2, %c0_3] : memref<1x32xf32, #tpu.memory_space<vmem>>, vector<1x32xf32>
    %2 = vector.shape_cast %1 : vector<1x32xf32> to vector<1x1x32xf32>
    %3 = vector.broadcast %2 : vector<1x1x32xf32> to vector<2x8x32xf32>
    %4 = arith.mulf %0, %3 : vector<2x8x32xf32>
    %cst = arith.constant dense<0.000000e+00> : vector<2x8xf32>
    %5 = vector.multi_reduction <add>, %4, %cst [2] : vector<2x8x32xf32> to vector<2x8xf32>
    %c0_4 = arith.constant 0 : index
    %c0_5 = arith.constant 0 : index
    %c0_6 = arith.constant 0 : index
    %6 = vector.load %arg5[%c0_4, %c0_5, %c0_6] : memref<2x1x1xi32, #tpu.memory_space<vmem>>, vector<2x1x1xi32>
    %7 = vector.shape_cast %6 : vector<2x1x1xi32> to vector<2x1xi32>
    %8 = tpu.iota {dimensions = array<i32: 1>} : vector<2x8xi32>
    %9 = vector.broadcast %7 : vector<2x1xi32> to vector<2x8xi32>
    %10 = arith.cmpi slt, %8, %9 : vector<2x8xi32>
    %cst_7 = arith.constant 0xFF800000 : f32
    %11 = vector.broadcast %cst_7 : f32 to vector<2x8xf32>
    %12 = arith.select %10, %5, %11 : vector<2x8xi1>, vector<2x8xf32>
    %cst_8 = arith.constant dense<0xFF800000> : vector<2xf32>
    %13 = vector.multi_reduction <maximumf>, %12, %cst_8 [1] : vector<2x8xf32> to vector<2xf32>
    %14 = vector.shape_cast %13 : vector<2xf32> to vector<2x1xf32>
    %15 = tpu.weird %14 : vector<2x1xf32> -> vector<2x1xi1>
    %cst_9 = arith.constant dense<true> : vector<2x1xi1>
    %16 = arith.xori %15, %cst_9 : vector<2x1xi1>
    %cst_10 = arith.constant 0.000000e+00 : f32
    %17 = vector.broadcast %cst_10 : f32 to vector<2x1xf32>
    %18 = arith.select %16, %14, %17 : vector<2x1xi1>, vector<2x1xf32>
    %19 = vector.broadcast %18 : vector<2x1xf32> to vector<2x8xf32>
    %20 = arith.subf %12, %19 : vector<2x8xf32>
    %21 = math.exp %20 : vector<2x8xf32>
    %cst_11 = arith.constant 0.000000e+00 : f32
    %22 = vector.broadcast %cst_11 : f32 to vector<2x8xf32>
    %23 = arith.select %10, %21, %22 : vector<2x8xi1>, vector<2x8xf32>
    %cst_12 = arith.constant dense<0.000000e+00> : vector<2xf32>
    %24 = vector.multi_reduction <add>, %23, %cst_12 [1] : vector<2x8xf32> to vector<2xf32>
    %25 = vector.shape_cast %24 : vector<2xf32> to vector<2x1xf32>
    %cst_13 = arith.constant 0.000000e+00 : f32
    %26 = vector.broadcast %cst_13 : f32 to vector<2x1xf32>
    %27 = arith.cmpf ogt, %25, %26 : vector<2x1xf32>
    %cst_14 = arith.constant 1.000000e+00 : f32
    %28 = vector.broadcast %cst_14 : f32 to vector<2x1xf32>
    %29 = arith.select %27, %25, %28 : vector<2x1xi1>, vector<2x1xf32>
    %30 = vector.broadcast %29 : vector<2x1xf32> to vector<2x8xf32>
    %31 = arith.divf %23, %30 : vector<2x8xf32>
    %32 = vector.shape_cast %31 : vector<2x8xf32> to vector<2x8x1xf32>
    %33 = vector.broadcast %32 : vector<2x8x1xf32> to vector<2x8x32xf32>
    %34 = arith.mulf %33, %0 : vector<2x8x32xf32>
    %cst_15 = arith.constant dense<0.000000e+00> : vector<2x32xf32>
    %35 = vector.multi_reduction <add>, %34, %cst_15 [1] : vector<2x8x32xf32> to vector<2x32xf32>
    %c0_16 = arith.constant 0 : index
    %c0_17 = arith.constant 0 : index
    %c0_18 = arith.constant 0 : index
    %36 = vector.load %arg4[%c0_16, %c0_17, %c0_18] : memref<2x1x1xi32, #tpu.memory_space<vmem>>, vector<2x1x1xi32>
    %c8_i32 = arith.constant 8 : i32
    %37 = arith.muli %arg1, %c8_i32 : i32
    %38 = tpu.iota {dimensions = array<i32: 1>} : vector<2x8x1xi32>
    %39 = vector.broadcast %37 : i32 to vector<2x8x1xi32>
    %40 = arith.addi %39, %38 : vector<2x8x1xi32>
    %41 = vector.broadcast %36 : vector<2x1x1xi32> to vector<2x8x1xi32>
    %42 = arith.cmpi slt, %40, %41 : vector<2x8x1xi32>
    %43 = vector.shape_cast %35 : vector<2x32xf32> to vector<2x1x32xf32>
    %cst_19 = arith.constant 0.000000e+00 : f32
    %44 = vector.shape_cast %42 : vector<2x8x1xi1> to vector<2x8x1xi1>
    %45 = vector.broadcast %44 : vector<2x8x1xi1> to vector<2x8x32xi1>
    %46 = vector.shape_cast %43 : vector<2x1x32xf32> to vector<2x1x32xf32>
    %47 = vector.broadcast %46 : vector<2x1x32xf32> to vector<2x8x32xf32>
    %48 = vector.broadcast %cst_19 : f32 to vector<2x8x32xf32>
    %49 = arith.select %45, %47, %48 : vector<2x8x32xi1>, vector<2x8x32xf32>
    %50 = vector.shape_cast %49 : vector<2x8x32xf32> to vector<2x1x256xf32>
    %c0_20 = arith.constant 0 : index
    %c0_21 = arith.constant 0 : index
    %c0_22 = arith.constant 0 : index
    %51 = vector.load %arg6[%c0_20, %c0_21, %c0_22] : memref<2x1x256xf32, #tpu.memory_space<vmem>>, vector<2x1x256xf32>
    tpu.vector_store %arg6[%c0_20, %c0_21, %c0_22], %50 {strides = array<i32>} : memref<2x1x256xf32, #tpu.memory_space<vmem>>, vector<2x1x256xf32>,
    return
  }
  func.func @transform_0(%arg0: i32, %arg1: i32) -> (i32, i32, i32) {
    %c0_i32 = arith.constant 0 : i32
    %c0_i32_0 = arith.constant 0 : i32
    %c0_i32_1 = arith.constant 0 : i32
    return %arg0, %c0_i32, %c0_i32_0 : i32, i32, i32
  }
  func.func @transform_1(%arg0: i32, %arg1: i32) -> (i32, i32) {
    %c0_i32 = arith.constant 0 : i32
    %c0_i32_0 = arith.constant 0 : i32
    %c0_i32_1 = arith.constant 0 : i32
    return %c0_i32, %c0_i32_0 : i32, i32
  }
  func.func @transform_2(%arg0: i32, %arg1: i32) -> (i32, i32, i32) {
    %c0_i32 = arith.constant 0 : i32
    %c0_i32_0 = arith.constant 0 : i32
    %c0_i32_1 = arith.constant 0 : i32
    return %arg0, %c0_i32, %c0_i32_0 : i32, i32, i32
  }
  func.func @transform_3(%arg0: i32, %arg1: i32) -> (i32, i32, i32) {
    %c0_i32 = arith.constant 0 : i32
    %c0_i32_0 = arith.constant 0 : i32
    %c0_i32_1 = arith.constant 0 : i32
    return %arg0, %c0_i32, %c0_i32_0 : i32, i32, i32
  }
  func.func @transform_4(%arg0: i32, %arg1: i32) -> (i32, i32, i32) {
    %c0_i32 = arith.constant 0 : i32
    %c0_i32_0 = arith.constant 0 : i32
    return %arg0, %c0_i32, %arg1 : i32, i32, i32
  }
}

module attributes {stable_mosaic.version = 11 : i64} {
  func.func @_context_matching_kernel(%arg0: i32, %arg1: i32, %arg2: memref<2x8x32xf32, #tpu.memory_space<vmem>>, %arg3: memref<1x32xf32, #tpu.memory_space<vmem>>, %arg4: memref<2x1x1xi32, #tpu.memory_space<vmem>>, %arg5: memref<2x1x1xi32, #tpu.memory_space<vmem>>, %arg6: memref<2x8x32xf32, #tpu.memory_space<vmem>>) attributes {dimension_semantics = [#tpu.dimension_semantics<parallel>, #tpu.dimension_semantics<parallel>], iteration_bounds = array<i64: 2, 1>, scalar_prefetch = 0 : i64, scratch_operands = 0 : i64, tpu.core_type = #tpu.core_type<tc>, window_params = [{transform_indices = @transform_0, window_bounds = array<i64: 2, 8, 32>}, {pipeline_mode = #tpu.pipeline_mode<synchronous>, transform_indices = @transform_1, window_bounds = array<i64: 1, 32>}, {transform_indices = @transform_2, window_bounds = array<i64: 2, 1, 1>}, {transform_indices = @transform_3, window_bounds = array<i64: 2, 1, 1>}, {transform_indices = @transform_4, window_bounds = array<i64: 2, 8, 32>}]} {
    %c0 = arith.constant 0 : index
    %c0_0 = arith.constant 0 : index
    %c0_1 = arith.constant 0 : index
    %0 = vector.load %arg2[%c0, %c0_0, %c0_1] : memref<2x8x32xf32, #tpu.memory_space<vmem>>, vector<2x8x32xf32>
    %c0_2 = arith.constant 0 : index
    %c0_3 = arith.constant 0 : index
    %1 = vector.load %arg3[%c0_2, %c0_3] : memref<1x32xf32, #tpu.memory_space<vmem>>, vector<1x32xf32>
    %2 = vector.shape_cast %1 : vector<1x32xf32> to vector<1x1x32xf32>
    %3 = vector.broadcast %2 : vector<1x1x32xf32> to vector<2x8x32xf32>
    %4 = arith.mulf %0, %3 : vector<2x8x32xf32>
    %cst = arith.constant dense<0.000000e+00> : vector<2x8xf32>
    %5 = vector.multi_reduction <add>, %4, %cst [2] : vector<2x8x32xf32> to vector<2x8xf32>
    %c0_4 = arith.constant 0 : index
    %c0_5 = arith.constant 0 : index
    %c0_6 = arith.constant 0 : index
    %6 = vector.load %arg5[%c0_4, %c0_5, %c0_6] : memref<2x1x1xi32, #tpu.memory_space<vmem>>, vector<2x1x1xi32>
    %7 = vector.shape_cast %6 : vector<2x1x1xi32> to vector<2x1xi32>
    %8 = tpu.iota {dimensions = array<i32: 1>} : vector<2x8xi32>
    %9 = vector.broadcast %7 : vector<2x1xi32> to vector<2x8xi32>
    %10 = arith.cmpi slt, %8, %9 : vector<2x8xi32>
    %cst_7 = arith.constant 0xFF800000 : f32
    %11 = vector.broadcast %cst_7 : f32 to vector<2x8xf32>
    %12 = arith.select %10, %5, %11 : vector<2x8xi1>, vector<2x8xf32>
    %cst_8 = arith.constant dense<0xFF800000> : vector<2xf32>
    %13 = vector.multi_reduction <maximumf>, %12, %cst_8 [1] : vector<2x8xf32> to vector<2xf32>
    %14 = vector.shape_cast %13 : vector<2xf32> to vector<2x1xf32>
    %15 = tpu.weird %14 : vector<2x1xf32> -> vector<2x1xi1>
    %cst_9 = arith.constant dense<true> : vector<2x1xi1>
    %16 = arith.xori %15, %cst_9 : vector<2x1xi1>
    %cst_10 = arith.constant 0.000000e+00 : f32
    %17 = vector.broadcast %cst_10 : f32 to vector<2x1xf32>
    %18 = arith.select %16, %14, %17 : vector<2x1xi1>, vector<2x1xf32>
    %19 = vector.broadcast %18 : vector<2x1xf32> to vector<2x8xf32>
    %20 = arith.subf %12, %19 : vector<2x8xf32>
    %21 = math.exp %20 : vector<2x8xf32>
    %cst_11 = arith.constant 0.000000e+00 : f32
    %22 = vector.broadcast %cst_11 : f32 to vector<2x8xf32>
    %23 = arith.select %10, %21, %22 : vector<2x8xi1>, vector<2x8xf32>
    %cst_12 = arith.constant dense<0.000000e+00> : vector<2xf32>
    %24 = vector.multi_reduction <add>, %23, %cst_12 [1] : vector<2x8xf32> to vector<2xf32>
    %25 = vector.shape_cast %24 : vector<2xf32> to vector<2x1xf32>
    %cst_13 = arith.constant 0.000000e+00 : f32
    %26 = vector.broadcast %cst_13 : f32 to vector<2x1xf32>
    %27 = arith.cmpf ogt, %25, %26 : vector<2x1xf32>
    %cst_14 = arith.constant 1.000000e+00 : f32
    %28 = vector.broadcast %cst_14 : f32 to vector<2x1xf32>
    %29 = arith.select %27, %25, %28 : vector<2x1xi1>, vector<2x1xf32>
    %30 = vector.broadcast %29 : vector<2x1xf32> to vector<2x8xf32>
    %31 = arith.divf %23, %30 : vector<2x8xf32>
    %32 = vector.shape_cast %31 : vector<2x8xf32> to vector<2x8x1xf32>
    %33 = vector.broadcast %32 : vector<2x8x1xf32> to vector<2x8x32xf32>
    %34 = arith.mulf %33, %0 : vector<2x8x32xf32>
    %cst_15 = arith.constant dense<0.000000e+00> : vector<2x32xf32>
    %35 = vector.multi_reduction <add>, %34, %cst_15 [1] : vector<2x8x32xf32> to vector<2x32xf32>
    %c0_16 = arith.constant 0 : index
    %c0_17 = arith.constant 0 : index
    %c0_18 = arith.constant 0 : index
    %36 = vector.load %arg4[%c0_16, %c0_17, %c0_18] : memref<2x1x1xi32, #tpu.memory_space<vmem>>, vector<2x1x1xi32>
    %c8_i32 = arith.constant 8 : i32
    %37 = arith.muli %arg1, %c8_i32 : i32
    %38 = tpu.iota {dimensions = array<i32: 1>} : vector<2x8x1xi32>
    %39 = vector.broadcast %37 : i32 to vector<2x8x1xi32>
    %40 = arith.addi %39, %38 : vector<2x8x1xi32>
    %41 = vector.broadcast %36 : vector<2x1x1xi32> to vector<2x8x1xi32>
    %42 = arith.cmpi slt, %40, %41 : vector<2x8x1xi32>
    %43 = vector.shape_cast %35 : vector<2x32xf32> to vector<2x1x32xf32>
    %cst_19 = arith.constant 0.000000e+00 : f32
    %44 = vector.shape_cast %42 : vector<2x8x1xi1> to vector<2x8x1xi1>
    %45 = vector.broadcast %44 : vector<2x8x1xi1> to vector<2x8x32xi1>
    %46 = vector.shape_cast %43 : vector<2x1x32xf32> to vector<2x1x32xf32>
    %47 = vector.broadcast %46 : vector<2x1x32xf32> to vector<2x8x32xf32>
    %48 = vector.broadcast %cst_19 : f32 to vector<2x8x32xf32>
    %49 = arith.select %45, %47, %48 : vector<2x8x32xi1>, vector<2x8x32xf32>
    %c0_20 = arith.constant 0 : index
    %c0_21 = arith.constant 0 : index
    %c0_22 = arith.constant 0 : index
    %50 = vector.load %arg6[%c0_20, %c0_21, %c0_22] : memref<2x8x32xf32, #tpu.memory_space<vmem>>, vector<2x8x32xf32>
    tpu.vector_store %arg6[%c0_20, %c0_21, %c0_22], %49 {strides = array<i32>} : memref<2x8x32xf32, #tpu.memory_space<vmem>>, vector<2x8x32xf32>,
    return
  }
  func.func @transform_0(%arg0: i32, %arg1: i32) -> (i32, i32, i32) {
    %c0_i32 = arith.constant 0 : i32
    %c0_i32_0 = arith.constant 0 : i32
    %c0_i32_1 = arith.constant 0 : i32
    return %arg0, %c0_i32, %c0_i32_0 : i32, i32, i32
  }
  func.func @transform_1(%arg0: i32, %arg1: i32) -> (i32, i32) {
    %c0_i32 = arith.constant 0 : i32
    %c0_i32_0 = arith.constant 0 : i32
    %c0_i32_1 = arith.constant 0 : i32
    return %c0_i32, %c0_i32_0 : i32, i32
  }
  func.func @transform_2(%arg0: i32, %arg1: i32) -> (i32, i32, i32) {
    %c0_i32 = arith.constant 0 : i32
    %c0_i32_0 = arith.constant 0 : i32
    %c0_i32_1 = arith.constant 0 : i32
    return %arg0, %c0_i32, %c0_i32_0 : i32, i32, i32
  }
  func.func @transform_3(%arg0: i32, %arg1: i32) -> (i32, i32, i32) {
    %c0_i32 = arith.constant 0 : i32
    %c0_i32_0 = arith.constant 0 : i32
    %c0_i32_1 = arith.constant 0 : i32
    return %arg0, %c0_i32, %c0_i32_0 : i32, i32, i32
  }
  func.func @transform_4(%arg0: i32, %arg1: i32) -> (i32, i32, i32) {
    %c0_i32 = arith.constant 0 : i32
    %c0_i32_0 = arith.constant 0 : i32
    return %arg0, %arg1, %c0_i32 : i32, i32, i32
  }
}

</mosaic_0001>

<llo_original>
// kernel: tpu_custom_call.1
$region0: #{tpu_custom_call.1}
  #allocation0 [shape = 'u32[]', space=smem, size = 0x4, offset = 0x4, fixed_abs, tag = 'smem constant byte address 0x4 - core index']
  #allocation1 [shape = 'u32[144,128]{1,0:T(1,128)}', space=vmem, size = 0x12000, scoped, tag = 'internal scratch']
  %s0 = inlined_call_operand.hbm [shape: f32[3,8,32], index: 0, kind: input, shape index: {}]
  %s1 = inlined_call_operand.vmem [shape: f32[1,32], index: 1, kind: input, shape index: {}]
  %s2 = inlined_call_operand.vmem [shape: s32[3,1,1], index: 2, kind: input, shape index: {}]
  %s3 = inlined_call_operand.vmem [shape: s32[3,1,1], index: 3, kind: input, shape index: {}]
  %s4 = inlined_call_operand.hbm [shape: f32[3,1,256], index: 4, kind: output, shape index: {}]
  %s5 = sld [smem:[#allocation0]]
  $region53: #{tpu_custom_call.1} parent=0
    _
  %s7 = ssub.s32 1, %s5
  %s8 = scalar_select 0, %s7, %s5
  $region1: #{tpu_custom_call.1} parent=0
    #allocation2 [shape = 'u8[16384]{0}', space=vmem, size = 0x4000, scoped, tag = 'input window, operand 0']
    #allocation3 [shape = 's32[2]{0}', space=sflag, size = 0x8, scoped, tag = 'scoped memory for tpu_custom_call.1']
    #allocation4 [shape = 's32[2]{0}', space=sflag, size = 0x8, scoped, tag = 'scoped memory for tpu_custom_call.1']
    #allocation5 [shape = 'u8[4096]{0}', space=vmem, size = 0x1000, scoped, tag = 'output window, operand 0']
    %9 = vsyncpa [#allocation3], 0
    %s10 = scalar_lea.sflag [#allocation3], 1
    %11 = vsyncpa %s10, 0
    %12 = vsyncpa [#allocation4], 0
    %s13 = scalar_lea.sflag [#allocation4], 1
    %14 = vsyncpa %s13, 0
    loop: start=0, step=1, limit=4
    $region2: #{tpu_custom_call.1} parent=1 // loop_pre_header
      _
    $region3: #{tpu_custom_call.1} parent=1 // loop_header
      %s16 = sphi 0, %s20
      %p17 = scmp.ge.s32.totalorder %s16, 4
      %s23 = sphi 0, %s35
      %s24 = sphi 0, %s31
      %s25 = sphi 0, %s23
      %s26 = sphi 0, %s24
      %s27 = sphi 0, %s25
      %s28 = sphi 0, %s26
      %s38 = sphi 0, %s40
      %s41 = sphi 0, %s38
      %s42 = sphi 0, %s41
      %s58 = sphi 0, %s42
      %s62 = sphi 0, %s62
      %s64 = sphi 0, %s62
      %s65 = sphi 0, %s64
      %s79 = sphi 0, %s65
      %s85 = sphi 0, %s87
      %s88 = sphi 0, %s85
      %s89 = sphi 0, %s88
      %s105 = sphi 0, %s89
      %s111 = sphi 0, %s113
      %s114 = sphi 0, %s111
      %s115 = sphi 0, %s114
      %s131 = sphi 0, %s115
      %s139 = sphi 0, %s141
      %s142 = sphi 0, %s139
      %s143 = sphi 0, %s142
      %s159 = sphi 0, %s143
    $region4: #{tpu_custom_call.1} parent=1 // loop_header_branch
      %19 = sbr.rel (%p17) target = $region8
    $region5: #{tpu_custom_call.1} parent=1 // loop_body
      %s21 = ssub.s32 %s16, 1
      %s22 = ssub.s32 %s16, 2
      %s29 = sadd.s32 1, %s24
      %p30 = scmp.ge.s32.totalorder %s29, 1
      %s31 = scalar_select %p30, 0, %s29
      %s32 = sadd.s32 1, %s23
      %s33 = scalar_select %p30, %s32, %s23
      %p34 = scmp.ge.s32.totalorder %s33, 2
      %s35 = scalar_select %p34, 0, %s33
      %s36 = ssub.s32 %s23, %s35
      %p37 = scmp.eq.s32.totalorder %s36, 0
      %s39 = sadd.s32 %s38, 1
      %s40 = scalar_select %p37, %s38, %s39
      %p43 = pneg %p37
      %p44 = scmp.eq.s32.totalorder %s16, 1
      %p45 = por %p43, %p44
      %p46 = scmp.ne.s32.totalorder %s38, %s41
      %p47 = scmp.eq.s32.totalorder %s16, 0
      %p48 = por %p46, %p47
      %p49 = scmp.ne.s32.totalorder %s38, %s41
      %p50 = scmp.eq.s32.totalorder %s21, 1
      %p51 = por %p49, %p50
      %p52 = scmp.ne.s32.totalorder %s41, %s42
      %p53 = scmp.eq.s32.totalorder %s21, 0
      %p54 = por %p52, %p53
      %p55 = scmp.ne.s32.totalorder %s41, %s42
      %p56 = scmp.eq.s32.totalorder %s22, 1
      %p57 = por %p55, %p56
      %p59 = scmp.ne.s32.totalorder %s42, %s58
      %p60 = scmp.eq.s32.totalorder %s22, 0
      %p61 = por %p59, %p60
      %s63 = sadd.s32 %s62, 1
      %p66 = scmp.eq.s32.totalorder %s16, 1
      %p67 = scmp.ne.s32.totalorder %s62, %s64
      %p68 = scmp.eq.s32.totalorder %s16, 0
      %p69 = por %p67, %p68
      %p70 = scmp.ne.s32.totalorder %s62, %s64
      %p71 = scmp.eq.s32.totalorder %s21, 1
      %p72 = por %p70, %p71
      %p73 = scmp.ne.s32.totalorder %s64, %s65
      %p74 = scmp.eq.s32.totalorder %s21, 0
      %p75 = por %p73, %p74
      %p76 = scmp.ne.s32.totalorder %s64, %s65
      %p77 = scmp.eq.s32.totalorder %s22, 1
      %p78 = por %p76, %p77
      %p80 = scmp.ne.s32.totalorder %s65, %s79
      %p81 = scmp.eq.s32.totalorder %s22, 0
      %p82 = por %p80, %p81
      %s83 = ssub.s32 %s23, %s35
      %p84 = scmp.eq.s32.totalorder %s83, 0
      %s86 = sadd.s32 %s85, 1
      %s87 = scalar_select %p84, %s85, %s86
      %p90 = pneg %p84
      %p91 = scmp.eq.s32.totalorder %s16, 1
      %p92 = por %p90, %p91
      %p93 = scmp.ne.s32.totalorder %s85, %s88
      %p94 = scmp.eq.s32.totalorder %s16, 0
      %p95 = por %p93, %p94
      %p96 = scmp.ne.s32.totalorder %s85, %s88
      %p97 = scmp.eq.s32.totalorder %s21, 1
      %p98 = por %p96, %p97
      %p99 = scmp.ne.s32.totalorder %s88, %s89
      %p100 = scmp.eq.s32.totalorder %s21, 0
      %p101 = por %p99, %p100
      %p102 = scmp.ne.s32.totalorder %s88, %s89
      %p103 = scmp.eq.s32.totalorder %s22, 1
      %p104 = por %p102, %p103
      %p106 = scmp.ne.s32.totalorder %s89, %s105
      %p107 = scmp.eq.s32.totalorder %s22, 0
      %p108 = por %p106, %p107
      %s109 = ssub.s32 %s23, %s35
      %p110 = scmp.eq.s32.totalorder %s109, 0
      %s112 = sadd.s32 %s111, 1
      %s113 = scalar_select %p110, %s111, %s112
      %p116 = pneg %p110
      %p117 = scmp.eq.s32.totalorder %s16, 1
      %p118 = por %p116, %p117
      %p119 = scmp.ne.s32.totalorder %s111, %s114
      %p120 = scmp.eq.s32.totalorder %s16, 0
      %p121 = por %p119, %p120
      %p122 = scmp.ne.s32.totalorder %s111, %s114
      %p123 = scmp.eq.s32.totalorder %s21, 1
      %p124 = por %p122, %p123
      %p125 = scmp.ne.s32.totalorder %s114, %s115
      %p126 = scmp.eq.s32.totalorder %s21, 0
      %p127 = por %p125, %p126
      %p128 = scmp.ne.s32.totalorder %s114, %s115
      %p129 = scmp.eq.s32.totalorder %s22, 1
      %p130 = por %p128, %p129
      %p132 = scmp.ne.s32.totalorder %s115, %s131
      %p133 = scmp.eq.s32.totalorder %s22, 0
      %p134 = por %p132, %p133
      %s135 = ssub.s32 %s23, %s35
      %s136 = ssub.s32 %s24, %s31
      %s137 = sor.u32 %s135, %s136
      %p138 = scmp.eq.s32.totalorder %s137, 0
      %s140 = sadd.s32 %s139, 1
      %s141 = scalar_select %p138, %s139, %s140
      %p144 = pneg %p138
      %p145 = scmp.eq.s32.totalorder %s16, 1
      %p146 = por %p144, %p145
      %p147 = scmp.ne.s32.totalorder %s139, %s142
      %p148 = scmp.eq.s32.totalorder %s16, 0
      %p149 = por %p147, %p148
      %p150 = scmp.ne.s32.totalorder %s139, %s142
      %p151 = scmp.eq.s32.totalorder %s21, 1
      %p152 = por %p150, %p151
      %p153 = scmp.ne.s32.totalorder %s142, %s143
      %p154 = scmp.eq.s32.totalorder %s21, 0
      %p155 = por %p153, %p154
      %p156 = scmp.ne.s32.totalorder %s142, %s143
      %p157 = scmp.eq.s32.totalorder %s22, 1
      %p158 = por %p156, %p157
      %p160 = scmp.ne.s32.totalorder %s143, %s159
      %p161 = scmp.eq.s32.totalorder %s22, 0
      %p162 = por %p160, %p161
      %p163 = scmp.le.s32.totalorder 1, %s16
      %p164 = scmp.lt.s32.totalorder %s16, 3
      %p165 = pnand %p163, %p164
      %p166 = pneg %p165
      // Predicated region
      $region9: #{tpu_custom_call.1} parent=5 // pred_check
        _
      $region10: #{tpu_custom_call.1} parent=5 // pred_check_branch
        %168 = sbr.rel (%p165) target = $region12
      $region11: #{tpu_custom_call.1} parent=5 // pred_region
        %s169 = ssub.s32 %s16, 1
        // Predicated region
        $region13: #{tpu_custom_call.1} parent=11 // pred_check
          %p170 = pneg %p75
        $region14: #{tpu_custom_call.1} parent=11 // pred_check_branch
          %172 = sbr.rel (%p170) target = $region16
        $region15: #{tpu_custom_call.1} parent=11 // pred_region
          _
        $region16: #{tpu_custom_call.1} parent=11 // pred_fallthru
          _
      $region12: #{tpu_custom_call.1} parent=5 // pred_fallthru
        _
      %p173 = scmp.lt.s32.totalorder %s16, 2
      // Predicated region
      $region17: #{tpu_custom_call.1} parent=5 // pred_check
        %p174 = pneg %p173
      $region18: #{tpu_custom_call.1} parent=5 // pred_check_branch
        %176 = sbr.rel (%p174) target = $region20
      $region19: #{tpu_custom_call.1} parent=5 // pred_region
        // Predicated region
        $region21: #{tpu_custom_call.1} parent=19 // pred_check
          %p177 = pneg %p48
        $region22: #{tpu_custom_call.1} parent=19 // pred_check_branch
          %179 = sbr.rel (%p177) target = $region24
        $region23: #{tpu_custom_call.1} parent=19 // pred_region
          %s180 = sand.u32 %s38, 1
          %s181 = scalar_lea.sflag [#allocation3], %s180
          %s182 = sand.u32 %s38, 1
          %s183 = smul.addr %s182, 16
          %s184 = scalar_lea.vmem [#allocation2], %s183
          %s185 = smul.u32 2, %s23
          %s186 = ssub.s32 3, %s185
          %p187 = scmp.lt.s32.totalorder %s186, 2
          %s188 = scalar_select %p187, %s186, 2
          %s189 = smul.u32 128, %s188
          %s191 = ssub.s32 256, %s189
          %192 = vsyncadd %s181, %s191
          %p193 = scmp.ne.s32.totalorder 0, %s189
          %s194 = smul.addr %s185, 128
          %s195 = scalar_lea.hbm %s0, %s194
          %s196 = smul.u32 8, %s188
          %s197 = sshll.u32 %s184, 4
          %s198 = int_to_ptr.vmem [resolvable:$true] %s197
          %s199 = sshll.u32 %s196, 4
          %203 = dma.hbm_to_vmem [thread:$0]  (%p193), %s195, %s199, %s198, %s181, 128, 128, 8
        $region24: #{tpu_custom_call.1} parent=19 // pred_fallthru
          _
        // Predicated region
        $region25: #{tpu_custom_call.1} parent=19 // pred_check
          %p204 = pneg %p95
        $region26: #{tpu_custom_call.1} parent=19 // pred_check_branch
          %206 = sbr.rel (%p204) target = $region28
        $region27: #{tpu_custom_call.1} parent=19 // pred_region
          %s207 = smul.u32 2, %s23
          %s208 = ssub.s32 3, %s207
          %p209 = scmp.lt.s32.totalorder %s208, 2
          %s210 = scalar_select %p209, %s208, 2
          %s211 = smul.u32 16, %s210
          %p212 = scmp.lt.s32.totalorder %s207, 2
          %s213 = scalar_select %p212, %s207, 2
          %s214 = scalar_lea.vmem %s2, %s213
          %s215 = smul.u32 2, %s23
          %s216 = ssub.s32 3, %s215
          %p217 = scmp.lt.s32.totalorder %s216, 2
          %s218 = scalar_select %p217, %s216, 2
          %s219 = smul.u32 16, %s218
        $region28: #{tpu_custom_call.1} parent=19 // pred_fallthru
          _
        // Predicated region
        $region29: #{tpu_custom_call.1} parent=19 // pred_check
          %p220 = pneg %p121
        $region30: #{tpu_custom_call.1} parent=19 // pred_check_branch
          %222 = sbr.rel (%p220) target = $region32
        $region31: #{tpu_custom_call.1} parent=19 // pred_region
          %s223 = smul.u32 2, %s23
          %s224 = ssub.s32 3, %s223
          %p225 = scmp.lt.s32.totalorder %s224, 2
          %s226 = scalar_select %p225, %s224, 2
          %s227 = smul.u32 16, %s226
          %p228 = scmp.lt.s32.totalorder %s223, 2
          %s229 = scalar_select %p228, %s223, 2
          %s230 = scalar_lea.vmem %s3, %s229
          %s231 = smul.u32 2, %s23
          %s232 = ssub.s32 3, %s231
          %p233 = scmp.lt.s32.totalorder %s232, 2
          %s234 = scalar_select %p233, %s232, 2
          %s235 = smul.u32 16, %s234
        $region32: #{tpu_custom_call.1} parent=19 // pred_fallthru
          _
      $region20: #{tpu_custom_call.1} parent=5 // pred_fallthru
        _
      %p236 = scmp.le.s32.totalorder 1, %s16
      %p237 = scmp.lt.s32.totalorder %s16, 3
      %p238 = pnand %p236, %p237
      %p239 = pneg %p238
      // Predicated region
      $region33: #{tpu_custom_call.1} parent=5 // pred_check
        _
      $region34: #{tpu_custom_call.1} parent=5 // pred_check_branch
        %241 = sbr.rel (%p238) target = $region36
      $region35: #{tpu_custom_call.1} parent=5 // pred_region
        %s242 = ssub.s32 %s16, 1
        %s243 = sand.u32 %s41, 1
        %s244 = scalar_lea.sflag [#allocation3], %s243
        %s245 = sand.u32 %s41, 1
        %s246 = smul.addr %s245, 16
        %s247 = scalar_lea.vmem [#allocation2], %s246
        // Predicated region
        $region37: #{tpu_custom_call.1} parent=35 // pred_check
          %p248 = pneg %p54
        $region38: #{tpu_custom_call.1} parent=35 // pred_check_branch
          %250 = sbr.rel (%p248) target = $region40
        $region39: #{tpu_custom_call.1} parent=35 // pred_region
          %251 = dma.done %s244, 256
        $region40: #{tpu_custom_call.1} parent=35 // pred_fallthru
          _
        %s252 = sand.u32 %s41, 1
        %s253 = scalar_lea.sflag [#allocation3], %s252
        %s254 = sand.u32 %s41, 1
        %s255 = smul.addr %s254, 16
        %s256 = scalar_lea.vmem [#allocation2], %s255
        %p257 = pneg %p54
        %p258 = pneg %p51
        %p259 = pneg %p75
        %p260 = pneg %p72
        %s261 = smul.u32 2, %s25
        %s262 = ssub.s32 3, %s261
        %p263 = scmp.lt.s32.totalorder %s262, 2
        %s264 = scalar_select %p263, %s262, 2
        %s265 = smul.u32 16, %s264
        %p266 = scmp.lt.s32.totalorder %s261, 2
        %s267 = scalar_select %p266, %s261, 2
        %s268 = scalar_lea.vmem %s2, %s267
        %p269 = pneg %p101
        %p270 = pneg %p98
        %s271 = smul.u32 2, %s25
        %s272 = ssub.s32 3, %s271
        %p273 = scmp.lt.s32.totalorder %s272, 2
        %s274 = scalar_select %p273, %s272, 2
        %s275 = smul.u32 16, %s274
        %p276 = scmp.lt.s32.totalorder %s271, 2
        %s277 = scalar_select %p276, %s271, 2
        %s278 = scalar_lea.vmem %s3, %s277
        %p279 = pneg %p127
        %p280 = pneg %p124
        %p281 = pneg %p155
        %p282 = pneg %p152
        %s283 = sand.u32 %s142, 1
        %s284 = scalar_lea.sflag [#allocation4], %s283
        %s285 = sand.u32 %s142, 1
        %s286 = smul.addr %s285, 4
        %s287 = scalar_lea.vmem [#allocation5], %s286
        %s288 = smul.u32 2, %s25
        %s289 = ssub.s32 3, %s288
        %p290 = scmp.lt.s32.totalorder %s289, 2
        %s291 = scalar_select %p290, %s289, 2
        %s292 = smul.u32 128, %s291
        %s293 = smul.u32 2, %s25
        %s294 = ssub.s32 3, %s293
        %p295 = scmp.lt.s32.totalorder %s294, 2
        %s296 = scalar_select %p295, %s294, 2
        %s297 = smul.u32 16, %s296
        %p298 = scmp.lt.s32.totalorder %s293, 2
        %s299 = scalar_select %p298, %s293, 2
        %s300 = scalar_lea.vmem %s2, %s299
        %s301 = smul.u32 2, %s25
        %s302 = ssub.s32 3, %s301
        %p303 = scmp.lt.s32.totalorder %s302, 2
        %s304 = scalar_select %p303, %s302, 2
        %s305 = smul.u32 16, %s304
        %s306 = smul.u32 2, %s25
        %s307 = ssub.s32 3, %s306
        %p308 = scmp.lt.s32.totalorder %s307, 2
        %s309 = scalar_select %p308, %s307, 2
        %s310 = smul.u32 16, %s309
        %p311 = scmp.lt.s32.totalorder %s306, 2
        %s312 = scalar_select %p311, %s306, 2
        %s313 = scalar_lea.vmem %s3, %s312
        %s314 = smul.u32 2, %s25
        %s315 = ssub.s32 3, %s314
        %p316 = scmp.lt.s32.totalorder %s315, 2
        %s317 = scalar_select %p316, %s315, 2
        %s318 = smul.u32 16, %s317
        %s319 = smul.u32 2, %s25
        %s320 = smul.u32 2, %s26
        %s321 = ssub.s32 3, %s319
        %p322 = scmp.lt.s32.totalorder %s321, 2
        %s323 = scalar_select %p322, %s321, 2
        %s324 = smul.u32 16, %s323
        %s325 = smul.u32 %s324, 2
        %v326 = vld [vmem:[%s247] sm:$0xff]
        %v327 = vld [vmem:[%s247 + $0x8] sm:$0xff]
        %v328 = vld [vmem:[%s1] sm:$0x1]
        %v330 = vlaneseq
        %v331 = vshrl.u32 %v330, 7
        %v332 = vsub.s32 0, %v331
        %v333 = vrot.slane %v328, %v332
        %v335 = vmul.f32 %v326, %v333
        %v336 = vmul.f32 %v327, %v333
        %vm337 = vcmask 261120
        %v338 = vsel %vm337, %v335, 0.0
        %339 = vadd.xlane.f32.xlu0 %v338
        %v340 = vpop.xlane.xlu0 %339
        %v341 = vsel %vm337, %v336, 0.0
        %342 = vadd.xlane.f32.xlu0 %v341
        %v343 = vpop.xlane.xlu0 %342
        %v344 = vld [vmem:[%s313] sm:$0x1]
        %v345 = vld [vmem:[%s313 + $0x1] sm:$0x1]
        %v346 = vlaneseq
        %v347 = vand.u32 %v346, 127
        %348 = vset.pattern.permute.xlu0 0
        %349 = vperm.xlu0 %348, %v344
        %v350 = vpop.permute.xlu0 %349
        %v351 = vlaneseq
        %v352 = vshrl.u32 %v351, 7
        %v353 = vsub.s32 0, %v352
        %v354 = vrot.slane %v350, %v353
        %355 = vset.pattern.permute.xlu0 0
        %356 = vperm.xlu0 %355, %v345
        %v357 = vpop.permute.xlu0 %356
        %v358 = vlaneseq
        %v359 = vshrl.u32 %v358, 7
        %v360 = vsub.s32 0, %v359
        %v361 = vrot.slane %v357, %v360
        %v362 = vcombine.low %v354, %v361
        %v364 = vunpack.c.l.s4 1966171168
        %v365 = vunpack.c.0.s8 %v364
        %v366 = vlaneseq
        %v367 = vshrl.u32 %v366, 7
        %v368 = vsub.s32 %v365, %v367
        %v369 = vrot.slane %v362, %v368
        %v371 = vunpack.c.l.s4 1966171168
        %v372 = vunpack.c.0.s8 %v371
        %v373 = vlaneseq
        %v374 = vshrl.u32 %v373, 7
        %v375 = vsub.s32 %v372, %v374
        %v376 = vrot.slane %v369, %v375
        %vm377 = vcmp.lt.s32.totalorder %v347, %v376
        %v380 = vlaneseq
        %v381 = vshrl.u32 %v380, 7
        %v382 = vsub.s32 %v347, %v381
        %v383 = vrot.slane %v340, %v382
        %v384 = vlaneseq
        %v385 = vshrl.u32 %v384, 7
        %v386 = vsub.s32 %v347, %v385
        %v387 = vrot.slane %v343, %v386
        %vm388 = vcmask 1041409
        %v389 = vsel %vm388, %v387, %v383
        %v391 = vsel %vm377, %v389, -inf
        %vm392 = vcmask 58368
        %v393 = vsel %vm392, %v391, -inf
        %394 = vmax.xlane.f32.xlu0 %v393
        %v395 = vpop.xlane.xlu0 %394
        %vm396 = vweird.f32 %v395
        %vm397 = vmxor %vm396, 1
        %v398 = vsel %vm397, %v395, 0.0
        %v399 = vsub.f32 %v391, %v398
        %v400 = vmul.f32 %v399, 1.442695
        %v401 = vpow.pop %v400
        %v402 = vsel %vm377, %v401, 0.0
        %v403 = vsel %vm392, %v402, 0.0
        %404 = vadd.xlane.f32.xlu0 %v403
        %v405 = vpop.xlane.xlu0 %404
        %vm406 = vcmp.gt.f32.partialorder %v405, 0.0
        %v407 = vsel %vm406, %v405, 1.0
        %v408 = vrcp.pop %v407
        %v409 = vmul.f32 %v402, %v408
        %v410 = vlaneseq
        %v411 = vshrl.u32 %v410, 7
        %v412 = vsub.s32 0, %v411
        %v413 = vrot.slane %v409, %v412
        %415 = vbcast.lane.b32.xlu0 %v413, 256
        %v416 = vpop.permute.xlu0 %415
        %v417 = vlaneseq
        %v418 = vshrl.u32 %v417, 7
        %v419 = vsub.s32 1, %v418
        %v420 = vrot.slane %v409, %v419
        %422 = vbcast.lane.b32.xlu0 %v420, 256
        %v423 = vpop.permute.xlu0 %422
        %v424 = vmul.f32 %v416, %v326
        %v425 = vmul.f32 %v423, %v327
        %v426 = vsel %vm337, %v424, 0.0
        %v427 = vrot.slane %v426, 4
        %v428 = vadd.f32 %v426, %v427
        %v429 = vrot.slane %v428, 2
        %v430 = vadd.f32 %v428, %v429
        %v431 = vrot.slane %v430, 1
        %v432 = vadd.f32 %v430, %v431
        %v433 = vsel %vm337, %v425, 0.0
        %v434 = vrot.slane %v433, 4
        %v435 = vadd.f32 %v433, %v434
        %v436 = vrot.slane %v435, 2
        %v437 = vadd.f32 %v435, %v436
        %v438 = vrot.slane %v437, 1
        %v439 = vadd.f32 %v437, %v438
        %v440 = vld [vmem:[%s300] sm:$0x1]
        %v441 = vld [vmem:[%s300 + $0x1] sm:$0x1]
        %s442 = smul.u32 %s26, 8
        %v443 = vlaneseq
        %v444 = vshrl.u32 %v443, 7
        %v445 = vstv %s442
        %v446 = vadd.s32 %v445, %v444
        %v447 = vlaneseq
        %v448 = vshrl.u32 %v447, 7
        %v449 = vsub.s32 0, %v448
        %v450 = vrot.slane %v440, %v449
        %v451 = vlaneseq
        %v452 = vshrl.u32 %v451, 7
        %v453 = vsub.s32 0, %v452
        %v454 = vrot.slane %v441, %v453
        %vm455 = vcmp.lt.s32.totalorder %v446, %v450
        %vm456 = vcmp.lt.s32.totalorder %v446, %v454
        %v457 = vsel %vm455, 1, 0
        %v458 = vsel %vm456, 1, 0
        %459 = vset.pattern.permute.xlu0 0
        %460 = vperm.xlu0 %459, %v457
        %v461 = vpop.permute.xlu0 %460
        %462 = vset.pattern.permute.xlu0 0
        %463 = vperm.xlu0 %462, %v458
        %v464 = vpop.permute.xlu0 %463
        %vm465 = vcmp.eq.s32.totalorder %v461, 1
        %vm466 = vcmp.eq.s32.totalorder %v464, 1
        %v467 = vsel %vm465, %v432, 0.0
        %v468 = vsel %vm466, %v439, 0.0
        %v469 = vcombine.high %v467, 0.0
        %v471 = vunpack.c.l.s4 1983009808
        %v472 = vunpack.c.0.s8 %v471
        %v473 = vlaneseq
        %v474 = vshrl.u32 %v473, 7
        %v475 = vsub.s32 %v472, %v474
        %v476 = vrot.slane %v467, %v475
        %v478 = vunpack.c.l.s4 1983009808
        %v479 = vunpack.c.0.s8 %v478
        %v480 = vlaneseq
        %v481 = vshrl.u32 %v480, 7
        %v482 = vsub.s32 %v479, %v481
        %v483 = vrot.slane %v469, %v482
        %v484 = vcombine.high %v476, 0.0
        %v486 = vunpack.c.l.s4 1934713408
        %v487 = vunpack.c.0.s8 %v486
        %v488 = vlaneseq
        %v489 = vshrl.u32 %v488, 7
        %v490 = vsub.s32 %v487, %v489
        %v491 = vrot.slane %v476, %v490
        %v493 = vunpack.c.l.s4 1934713408
        %v494 = vunpack.c.0.s8 %v493
        %v495 = vlaneseq
        %v496 = vshrl.u32 %v495, 7
        %v497 = vsub.s32 %v494, %v496
        %v498 = vrot.slane %v484, %v497
        %v499 = vcombine.high %v483, 0.0
        %v501 = vunpack.c.l.s4 1934713408
        %v502 = vunpack.c.0.s8 %v501
        %v503 = vlaneseq
        %v504 = vshrl.u32 %v503, 7
        %v505 = vsub.s32 %v502, %v504
        %v506 = vrot.slane %v483, %v505
        %v508 = vunpack.c.l.s4 1934713408
        %v509 = vunpack.c.0.s8 %v508
        %v510 = vlaneseq
        %v511 = vshrl.u32 %v510, 7
        %v512 = vsub.s32 %v509, %v511
        %v513 = vrot.slane %v499, %v512
        %v514 = vcombine.high %v491, 0.0
        %v515 = vcombine.high %v498, 0.0
        %v516 = vcombine.high %v506, 0.0
        %v517 = vcombine.high %v513, 0.0
        %v518 = vcombine.high %v468, 0.0
        %v520 = vunpack.c.l.s4 1983009808
        %v521 = vunpack.c.0.s8 %v520
        %v522 = vlaneseq
        %v523 = vshrl.u32 %v522, 7
        %v524 = vsub.s32 %v521, %v523
        %v525 = vrot.slane %v468, %v524
        %v527 = vunpack.c.l.s4 1983009808
        %v528 = vunpack.c.0.s8 %v527
        %v529 = vlaneseq
        %v530 = vshrl.u32 %v529, 7
        %v531 = vsub.s32 %v528, %v530
        %v532 = vrot.slane %v518, %v531
        %v533 = vcombine.high %v525, 0.0
        %v535 = vunpack.c.l.s4 1934713408
        %v536 = vunpack.c.0.s8 %v535
        %v537 = vlaneseq
        %v538 = vshrl.u32 %v537, 7
        %v539 = vsub.s32 %v536, %v538
        %v540 = vrot.slane %v525, %v539
        %v542 = vunpack.c.l.s4 1934713408
        %v543 = vunpack.c.0.s8 %v542
        %v544 = vlaneseq
        %v545 = vshrl.u32 %v544, 7
        %v546 = vsub.s32 %v543, %v545
        %v547 = vrot.slane %v533, %v546
        %v548 = vcombine.high %v532, 0.0
        %v550 = vunpack.c.l.s4 1934713408
        %v551 = vunpack.c.0.s8 %v550
        %v552 = vlaneseq
        %v553 = vshrl.u32 %v552, 7
        %v554 = vsub.s32 %v551, %v553
        %v555 = vrot.slane %v532, %v554
        %v557 = vunpack.c.l.s4 1934713408
        %v558 = vunpack.c.0.s8 %v557
        %v559 = vlaneseq
        %v560 = vshrl.u32 %v559, 7
        %v561 = vsub.s32 %v558, %v560
        %v562 = vrot.slane %v548, %v561
        %v563 = vcombine.high %v540, 0.0
        %v564 = vcombine.high %v547, 0.0
        %v565 = vcombine.high %v555, 0.0
        %v566 = vcombine.high %v562, 0.0
        %569 = vrot.lane.b32.xlu0 %v514, 32
        %v570 = vpop.permute.xlu0 %569
        %571 = vrot.lane.b32.xlu0 %v563, 32
        %v572 = vpop.permute.xlu0 %571
        %577 = vrot.lane.b32.xlu0 %v498, 64
        %v578 = vpop.permute.xlu0 %577
        %579 = vrot.lane.b32.xlu0 %v547, 64
        %v580 = vpop.permute.xlu0 %579
        %585 = vrot.lane.b32.xlu0 %v515, 96
        %v586 = vpop.permute.xlu0 %585
        %587 = vrot.lane.b32.xlu0 %v564, 96
        %v588 = vpop.permute.xlu0 %587
        %593 = vrot.lane.b32.xlu0 %v516, 32
        %v594 = vpop.permute.xlu0 %593
        %595 = vrot.lane.b32.xlu0 %v565, 32
        %v596 = vpop.permute.xlu0 %595
        %601 = vrot.lane.b32.xlu0 %v513, 64
        %v602 = vpop.permute.xlu0 %601
        %603 = vrot.lane.b32.xlu0 %v562, 64
        %v604 = vpop.permute.xlu0 %603
        %609 = vrot.lane.b32.xlu0 %v517, 96
        %v610 = vpop.permute.xlu0 %609
        %611 = vrot.lane.b32.xlu0 %v566, 96
        %v612 = vpop.permute.xlu0 %611
        %v615 = vsel %vm337, %v491, %v570
        %v616 = vsel %vm337, %v540, %v572
        %vm617 = vcmask 523264
        %v618 = vsel %vm617, %v615, %v578
        %v619 = vsel %vm617, %v616, %v580
        %vm620 = vcmask 785408
        %v621 = vsel %vm620, %v618, %v586
        %v622 = vsel %vm620, %v619, %v588
        %v623 = vsel %vm337, %v506, %v594
        %v624 = vsel %vm337, %v555, %v596
        %v625 = vsel %vm617, %v623, %v602
        %v626 = vsel %vm617, %v624, %v604
        %v627 = vsel %vm620, %v625, %v610
        %v628 = vsel %vm620, %v626, %v612
        %v633 = vcombine.low %v621, %v627
        %v635 = vunpack.c.l.s4 1966171168
        %v636 = vunpack.c.0.s8 %v635
        %v637 = vlaneseq
        %v638 = vshrl.u32 %v637, 7
        %v639 = vsub.s32 %v636, %v638
        %v640 = vrot.slane %v633, %v639
        %v642 = vunpack.c.l.s4 1966171168
        %v643 = vunpack.c.0.s8 %v642
        %v644 = vlaneseq
        %v645 = vshrl.u32 %v644, 7
        %v646 = vsub.s32 %v643, %v645
        %v647 = vrot.slane %v640, %v646
        %v648 = vcombine.low %v622, %v628
        %v650 = vunpack.c.l.s4 1966171168
        %v651 = vunpack.c.0.s8 %v650
        %v652 = vlaneseq
        %v653 = vshrl.u32 %v652, 7
        %v654 = vsub.s32 %v651, %v653
        %v655 = vrot.slane %v648, %v654
        %v657 = vunpack.c.l.s4 1966171168
        %v658 = vunpack.c.0.s8 %v657
        %v659 = vlaneseq
        %v660 = vshrl.u32 %v659, 7
        %v661 = vsub.s32 %v658, %v660
        %v662 = vrot.slane %v655, %v661
        %v665 = vlaneseq
        %vm666 = vcmp.ge.s32.totalorder %v665, 0
        %vm667 = vcmp.lt.s32.totalorder %v665, 256
        %vm668 = vmand %vm666, %vm667
        %669 = vst.msk [vmem:[%s287] sm:$0x3] %vm668, %v647
        %670 = vst.msk [vmem:[%s287 + $0x2] sm:$0x3] %vm668, %v662
        %s671 = sand.u32 %s142, 1
        %s672 = scalar_lea.sflag [#allocation4], %s671
        %s673 = sand.u32 %s142, 1
        %s674 = smul.addr %s673, 4
        %s675 = scalar_lea.vmem [#allocation5], %s674
        // Predicated region
        $region41: #{tpu_custom_call.1} parent=35 // pred_check
          %p676 = pneg %p152
        $region42: #{tpu_custom_call.1} parent=35 // pred_check_branch
          %678 = sbr.rel (%p676) target = $region44
        $region43: #{tpu_custom_call.1} parent=35 // pred_region
          %s679 = smul.u32 2, %s25
          %s680 = smul.u32 2, %s26
          %s681 = ssub.s32 3, %s679
          %p682 = scmp.lt.s32.totalorder %s681, 2
          %s683 = scalar_select %p682, %s681, 2
          %s684 = smul.u32 16, %s683
          %s685 = smul.u32 %s684, 2
          %s687 = ssub.s32 64, %s685
          %688 = vsyncadd %s672, %s687
          %p689 = scmp.ne.s32.totalorder 0, %s685
          %s690 = smul.addr %s679, 2
          %s691 = sadd.s32 %s680, %s690
          %s692 = smul.addr %s691, 16
          %s693 = scalar_lea.hbm %s4, %s692
          %s694 = smul.u32 2, %s683
          %s695 = sshll.u32 %s675, 4
          %s696 = int_to_ptr.vmem [resolvable:$true] %s695
          %s697 = sshll.u32 %s694, 4
          %701 = dma.vmem_to_hbm [thread:$0]  (%p689), %s696, %s697, %s693, %s672, 32, 32, 2
        $region44: #{tpu_custom_call.1} parent=35 // pred_fallthru
          _
      $region36: #{tpu_custom_call.1} parent=5 // pred_fallthru
        _
      %p702 = scmp.le.s32.totalorder 2, %s16
      // Predicated region
      $region45: #{tpu_custom_call.1} parent=5 // pred_check
        %p703 = pneg %p702
      $region46: #{tpu_custom_call.1} parent=5 // pred_check_branch
        %705 = sbr.rel (%p703) target = $region48
      $region47: #{tpu_custom_call.1} parent=5 // pred_region
        %s706 = ssub.s32 %s16, 2
        // Predicated region
        $region49: #{tpu_custom_call.1} parent=47 // pred_check
          %p707 = pneg %p158
        $region50: #{tpu_custom_call.1} parent=47 // pred_check_branch
          %709 = sbr.rel (%p707) target = $region52
        $region51: #{tpu_custom_call.1} parent=47 // pred_region
          %s710 = sand.u32 %s143, 1
          %s711 = scalar_lea.sflag [#allocation4], %s710
          %s712 = sand.u32 %s143, 1
          %s713 = smul.addr %s712, 4
          %s714 = scalar_lea.vmem [#allocation5], %s713
          %715 = dma.done %s711, 64
        $region52: #{tpu_custom_call.1} parent=47 // pred_fallthru
          _
      $region48: #{tpu_custom_call.1} parent=5 // pred_fallthru
        _
    $region6: #{tpu_custom_call.1} parent=1 // loop_footer
      %s20 = sadd.s32 1, %s16
    $region7: #{tpu_custom_call.1} parent=1 // loop_footer_branch
      %15 = sbr.rel target = $region3
    $region8: #{tpu_custom_call.1} parent=1 // loop_exit
      _
    %716 = vsyncpa [#allocation3], 1
    %s717 = scalar_lea.sflag [#allocation3], 1
    %718 = vsyncpa %s717, 1
    %719 = vsyncpa [#allocation4], 1
    %s720 = scalar_lea.sflag [#allocation4], 1
    %721 = vsyncpa %s720, 1

// kernel: tpu_custom_call.1
$region0: #{tpu_custom_call.1}
  #allocation0 [shape = 'u32[]', space=smem, size = 0x4, offset = 0x4, fixed_abs, tag = 'smem constant byte address 0x4 - core index']
  #allocation1 [shape = 'u32[144,128]{1,0:T(1,128)}', space=vmem, size = 0x12000, scoped, tag = 'internal scratch']
  %s0 = inlined_call_operand.hbm [shape: f32[3,8,32], index: 0, kind: input, shape index: {}]
  %s1 = inlined_call_operand.vmem [shape: f32[1,32], index: 1, kind: input, shape index: {}]
  %s2 = inlined_call_operand.vmem [shape: s32[3,1,1], index: 2, kind: input, shape index: {}]
  %s3 = inlined_call_operand.vmem [shape: s32[3,1,1], index: 3, kind: input, shape index: {}]
  %s4 = inlined_call_operand.hbm [shape: f32[3,8,32], index: 4, kind: output, shape index: {}]
  %s5 = sld [smem:[#allocation0]]
  $region53: #{tpu_custom_call.1} parent=0
    _
  %s7 = ssub.s32 1, %s5
  %s8 = scalar_select 0, %s7, %s5
  $region1: #{tpu_custom_call.1} parent=0
    #allocation2 [shape = 'u8[16384]{0}', space=vmem, size = 0x4000, scoped, tag = 'input window, operand 0']
    #allocation3 [shape = 's32[2]{0}', space=sflag, size = 0x8, scoped, tag = 'scoped memory for tpu_custom_call.1']
    #allocation4 [shape = 's32[2]{0}', space=sflag, size = 0x8, scoped, tag = 'scoped memory for tpu_custom_call.1']
    #allocation5 [shape = 'u8[16384]{0}', space=vmem, size = 0x4000, scoped, tag = 'output window, operand 0']
    %9 = vsyncpa [#allocation3], 0
    %s10 = scalar_lea.sflag [#allocation3], 1
    %11 = vsyncpa %s10, 0
    %12 = vsyncpa [#allocation4], 0
    %s13 = scalar_lea.sflag [#allocation4], 1
    %14 = vsyncpa %s13, 0
    loop: start=0, step=1, limit=4
    $region2: #{tpu_custom_call.1} parent=1 // loop_pre_header
      _
    $region3: #{tpu_custom_call.1} parent=1 // loop_header
      %s16 = sphi 0, %s20
      %p17 = scmp.ge.s32.totalorder %s16, 4
      %s23 = sphi 0, %s35
      %s24 = sphi 0, %s31
      %s25 = sphi 0, %s23
      %s26 = sphi 0, %s24
      %s27 = sphi 0, %s25
      %s28 = sphi 0, %s26
      %s38 = sphi 0, %s40
      %s41 = sphi 0, %s38
      %s42 = sphi 0, %s41
      %s58 = sphi 0, %s42
      %s62 = sphi 0, %s62
      %s64 = sphi 0, %s62
      %s65 = sphi 0, %s64
      %s79 = sphi 0, %s65
      %s85 = sphi 0, %s87
      %s88 = sphi 0, %s85
      %s89 = sphi 0, %s88
      %s105 = sphi 0, %s89
      %s111 = sphi 0, %s113
      %s114 = sphi 0, %s111
      %s115 = sphi 0, %s114
      %s131 = sphi 0, %s115
      %s139 = sphi 0, %s141
      %s142 = sphi 0, %s139
      %s143 = sphi 0, %s142
      %s159 = sphi 0, %s143
    $region4: #{tpu_custom_call.1} parent=1 // loop_header_branch
      %19 = sbr.rel (%p17) target = $region8
    $region5: #{tpu_custom_call.1} parent=1 // loop_body
      %s21 = ssub.s32 %s16, 1
      %s22 = ssub.s32 %s16, 2
      %s29 = sadd.s32 1, %s24
      %p30 = scmp.ge.s32.totalorder %s29, 1
      %s31 = scalar_select %p30, 0, %s29
      %s32 = sadd.s32 1, %s23
      %s33 = scalar_select %p30, %s32, %s23
      %p34 = scmp.ge.s32.totalorder %s33, 2
      %s35 = scalar_select %p34, 0, %s33
      %s36 = ssub.s32 %s23, %s35
      %p37 = scmp.eq.s32.totalorder %s36, 0
      %s39 = sadd.s32 %s38, 1
      %s40 = scalar_select %p37, %s38, %s39
      %p43 = pneg %p37
      %p44 = scmp.eq.s32.totalorder %s16, 1
      %p45 = por %p43, %p44
      %p46 = scmp.ne.s32.totalorder %s38, %s41
      %p47 = scmp.eq.s32.totalorder %s16, 0
      %p48 = por %p46, %p47
      %p49 = scmp.ne.s32.totalorder %s38, %s41
      %p50 = scmp.eq.s32.totalorder %s21, 1
      %p51 = por %p49, %p50
      %p52 = scmp.ne.s32.totalorder %s41, %s42
      %p53 = scmp.eq.s32.totalorder %s21, 0
      %p54 = por %p52, %p53
      %p55 = scmp.ne.s32.totalorder %s41, %s42
      %p56 = scmp.eq.s32.totalorder %s22, 1
      %p57 = por %p55, %p56
      %p59 = scmp.ne.s32.totalorder %s42, %s58
      %p60 = scmp.eq.s32.totalorder %s22, 0
      %p61 = por %p59, %p60
      %s63 = sadd.s32 %s62, 1
      %p66 = scmp.eq.s32.totalorder %s16, 1
      %p67 = scmp.ne.s32.totalorder %s62, %s64
      %p68 = scmp.eq.s32.totalorder %s16, 0
      %p69 = por %p67, %p68
      %p70 = scmp.ne.s32.totalorder %s62, %s64
      %p71 = scmp.eq.s32.totalorder %s21, 1
      %p72 = por %p70, %p71
      %p73 = scmp.ne.s32.totalorder %s64, %s65
      %p74 = scmp.eq.s32.totalorder %s21, 0
      %p75 = por %p73, %p74
      %p76 = scmp.ne.s32.totalorder %s64, %s65
      %p77 = scmp.eq.s32.totalorder %s22, 1
      %p78 = por %p76, %p77
      %p80 = scmp.ne.s32.totalorder %s65, %s79
      %p81 = scmp.eq.s32.totalorder %s22, 0
      %p82 = por %p80, %p81
      %s83 = ssub.s32 %s23, %s35
      %p84 = scmp.eq.s32.totalorder %s83, 0
      %s86 = sadd.s32 %s85, 1
      %s87 = scalar_select %p84, %s85, %s86
      %p90 = pneg %p84
      %p91 = scmp.eq.s32.totalorder %s16, 1
      %p92 = por %p90, %p91
      %p93 = scmp.ne.s32.totalorder %s85, %s88
      %p94 = scmp.eq.s32.totalorder %s16, 0
      %p95 = por %p93, %p94
      %p96 = scmp.ne.s32.totalorder %s85, %s88
      %p97 = scmp.eq.s32.totalorder %s21, 1
      %p98 = por %p96, %p97
      %p99 = scmp.ne.s32.totalorder %s88, %s89
      %p100 = scmp.eq.s32.totalorder %s21, 0
      %p101 = por %p99, %p100
      %p102 = scmp.ne.s32.totalorder %s88, %s89
      %p103 = scmp.eq.s32.totalorder %s22, 1
      %p104 = por %p102, %p103
      %p106 = scmp.ne.s32.totalorder %s89, %s105
      %p107 = scmp.eq.s32.totalorder %s22, 0
      %p108 = por %p106, %p107
      %s109 = ssub.s32 %s23, %s35
      %p110 = scmp.eq.s32.totalorder %s109, 0
      %s112 = sadd.s32 %s111, 1
      %s113 = scalar_select %p110, %s111, %s112
      %p116 = pneg %p110
      %p117 = scmp.eq.s32.totalorder %s16, 1
      %p118 = por %p116, %p117
      %p119 = scmp.ne.s32.totalorder %s111, %s114
      %p120 = scmp.eq.s32.totalorder %s16, 0
      %p121 = por %p119, %p120
      %p122 = scmp.ne.s32.totalorder %s111, %s114
      %p123 = scmp.eq.s32.totalorder %s21, 1
      %p124 = por %p122, %p123
      %p125 = scmp.ne.s32.totalorder %s114, %s115
      %p126 = scmp.eq.s32.totalorder %s21, 0
      %p127 = por %p125, %p126
      %p128 = scmp.ne.s32.totalorder %s114, %s115
      %p129 = scmp.eq.s32.totalorder %s22, 1
      %p130 = por %p128, %p129
      %p132 = scmp.ne.s32.totalorder %s115, %s131
      %p133 = scmp.eq.s32.totalorder %s22, 0
      %p134 = por %p132, %p133
      %s135 = ssub.s32 %s23, %s35
      %s136 = ssub.s32 %s24, %s31
      %s137 = sor.u32 %s135, %s136
      %p138 = scmp.eq.s32.totalorder %s137, 0
      %s140 = sadd.s32 %s139, 1
      %s141 = scalar_select %p138, %s139, %s140
      %p144 = pneg %p138
      %p145 = scmp.eq.s32.totalorder %s16, 1
      %p146 = por %p144, %p145
      %p147 = scmp.ne.s32.totalorder %s139, %s142
      %p148 = scmp.eq.s32.totalorder %s16, 0
      %p149 = por %p147, %p148
      %p150 = scmp.ne.s32.totalorder %s139, %s142
      %p151 = scmp.eq.s32.totalorder %s21, 1
      %p152 = por %p150, %p151
      %p153 = scmp.ne.s32.totalorder %s142, %s143
      %p154 = scmp.eq.s32.totalorder %s21, 0
      %p155 = por %p153, %p154
      %p156 = scmp.ne.s32.totalorder %s142, %s143
      %p157 = scmp.eq.s32.totalorder %s22, 1
      %p158 = por %p156, %p157
      %p160 = scmp.ne.s32.totalorder %s143, %s159
      %p161 = scmp.eq.s32.totalorder %s22, 0
      %p162 = por %p160, %p161
      %p163 = scmp.le.s32.totalorder 1, %s16
      %p164 = scmp.lt.s32.totalorder %s16, 3
      %p165 = pnand %p163, %p164
      %p166 = pneg %p165
      // Predicated region
      $region9: #{tpu_custom_call.1} parent=5 // pred_check
        _
      $region10: #{tpu_custom_call.1} parent=5 // pred_check_branch
        %168 = sbr.rel (%p165) target = $region12
      $region11: #{tpu_custom_call.1} parent=5 // pred_region
        %s169 = ssub.s32 %s16, 1
        // Predicated region
        $region13: #{tpu_custom_call.1} parent=11 // pred_check
          %p170 = pneg %p75
        $region14: #{tpu_custom_call.1} parent=11 // pred_check_branch
          %172 = sbr.rel (%p170) target = $region16
        $region15: #{tpu_custom_call.1} parent=11 // pred_region
          _
        $region16: #{tpu_custom_call.1} parent=11 // pred_fallthru
          _
      $region12: #{tpu_custom_call.1} parent=5 // pred_fallthru
        _
      %p173 = scmp.lt.s32.totalorder %s16, 2
      // Predicated region
      $region17: #{tpu_custom_call.1} parent=5 // pred_check
        %p174 = pneg %p173
      $region18: #{tpu_custom_call.1} parent=5 // pred_check_branch
        %176 = sbr.rel (%p174) target = $region20
      $region19: #{tpu_custom_call.1} parent=5 // pred_region
        // Predicated region
        $region21: #{tpu_custom_call.1} parent=19 // pred_check
          %p177 = pneg %p48
        $region22: #{tpu_custom_call.1} parent=19 // pred_check_branch
          %179 = sbr.rel (%p177) target = $region24
        $region23: #{tpu_custom_call.1} parent=19 // pred_region
          %s180 = sand.u32 %s38, 1
          %s181 = scalar_lea.sflag [#allocation3], %s180
          %s182 = sand.u32 %s38, 1
          %s183 = smul.addr %s182, 16
          %s184 = scalar_lea.vmem [#allocation2], %s183
          %s185 = smul.u32 2, %s23
          %s186 = ssub.s32 3, %s185
          %p187 = scmp.lt.s32.totalorder %s186, 2
          %s188 = scalar_select %p187, %s186, 2
          %s189 = smul.u32 128, %s188
          %s191 = ssub.s32 256, %s189
          %192 = vsyncadd %s181, %s191
          %p193 = scmp.ne.s32.totalorder 0, %s189
          %s194 = smul.addr %s185, 128
          %s195 = scalar_lea.hbm %s0, %s194
          %s196 = smul.u32 8, %s188
          %s197 = sshll.u32 %s184, 4
          %s198 = int_to_ptr.vmem [resolvable:$true] %s197
          %s199 = sshll.u32 %s196, 4
          %203 = dma.hbm_to_vmem [thread:$0]  (%p193), %s195, %s199, %s198, %s181, 128, 128, 8
        $region24: #{tpu_custom_call.1} parent=19 // pred_fallthru
          _
        // Predicated region
        $region25: #{tpu_custom_call.1} parent=19 // pred_check
          %p204 = pneg %p95
        $region26: #{tpu_custom_call.1} parent=19 // pred_check_branch
          %206 = sbr.rel (%p204) target = $region28
        $region27: #{tpu_custom_call.1} parent=19 // pred_region
          %s207 = smul.u32 2, %s23
          %s208 = ssub.s32 3, %s207
          %p209 = scmp.lt.s32.totalorder %s208, 2
          %s210 = scalar_select %p209, %s208, 2
          %s211 = smul.u32 16, %s210
          %p212 = scmp.lt.s32.totalorder %s207, 2
          %s213 = scalar_select %p212, %s207, 2
          %s214 = scalar_lea.vmem %s2, %s213
          %s215 = smul.u32 2, %s23
          %s216 = ssub.s32 3, %s215
          %p217 = scmp.lt.s32.totalorder %s216, 2
          %s218 = scalar_select %p217, %s216, 2
          %s219 = smul.u32 16, %s218
        $region28: #{tpu_custom_call.1} parent=19 // pred_fallthru
          _
        // Predicated region
        $region29: #{tpu_custom_call.1} parent=19 // pred_check
          %p220 = pneg %p121
        $region30: #{tpu_custom_call.1} parent=19 // pred_check_branch
          %222 = sbr.rel (%p220) target = $region32
        $region31: #{tpu_custom_call.1} parent=19 // pred_region
          %s223 = smul.u32 2, %s23
          %s224 = ssub.s32 3, %s223
          %p225 = scmp.lt.s32.totalorder %s224, 2
          %s226 = scalar_select %p225, %s224, 2
          %s227 = smul.u32 16, %s226
          %p228 = scmp.lt.s32.totalorder %s223, 2
          %s229 = scalar_select %p228, %s223, 2
          %s230 = scalar_lea.vmem %s3, %s229
          %s231 = smul.u32 2, %s23
          %s232 = ssub.s32 3, %s231
          %p233 = scmp.lt.s32.totalorder %s232, 2
          %s234 = scalar_select %p233, %s232, 2
          %s235 = smul.u32 16, %s234
        $region32: #{tpu_custom_call.1} parent=19 // pred_fallthru
          _
      $region20: #{tpu_custom_call.1} parent=5 // pred_fallthru
        _
      %p236 = scmp.le.s32.totalorder 1, %s16
      %p237 = scmp.lt.s32.totalorder %s16, 3
      %p238 = pnand %p236, %p237
      %p239 = pneg %p238
      // Predicated region
      $region33: #{tpu_custom_call.1} parent=5 // pred_check
        _
      $region34: #{tpu_custom_call.1} parent=5 // pred_check_branch
        %241 = sbr.rel (%p238) target = $region36
      $region35: #{tpu_custom_call.1} parent=5 // pred_region
        %s242 = ssub.s32 %s16, 1
        %s243 = sand.u32 %s41, 1
        %s244 = scalar_lea.sflag [#allocation3], %s243
        %s245 = sand.u32 %s41, 1
        %s246 = smul.addr %s245, 16
        %s247 = scalar_lea.vmem [#allocation2], %s246
        // Predicated region
        $region37: #{tpu_custom_call.1} parent=35 // pred_check
          %p248 = pneg %p54
        $region38: #{tpu_custom_call.1} parent=35 // pred_check_branch
          %250 = sbr.rel (%p248) target = $region40
        $region39: #{tpu_custom_call.1} parent=35 // pred_region
          %251 = dma.done %s244, 256
        $region40: #{tpu_custom_call.1} parent=35 // pred_fallthru
          _
        %s252 = sand.u32 %s41, 1
        %s253 = scalar_lea.sflag [#allocation3], %s252
        %s254 = sand.u32 %s41, 1
        %s255 = smul.addr %s254, 16
        %s256 = scalar_lea.vmem [#allocation2], %s255
        %p257 = pneg %p54
        %p258 = pneg %p51
        %p259 = pneg %p75
        %p260 = pneg %p72
        %s261 = smul.u32 2, %s25
        %s262 = ssub.s32 3, %s261
        %p263 = scmp.lt.s32.totalorder %s262, 2
        %s264 = scalar_select %p263, %s262, 2
        %s265 = smul.u32 16, %s264
        %p266 = scmp.lt.s32.totalorder %s261, 2
        %s267 = scalar_select %p266, %s261, 2
        %s268 = scalar_lea.vmem %s2, %s267
        %p269 = pneg %p101
        %p270 = pneg %p98
        %s271 = smul.u32 2, %s25
        %s272 = ssub.s32 3, %s271
        %p273 = scmp.lt.s32.totalorder %s272, 2
        %s274 = scalar_select %p273, %s272, 2
        %s275 = smul.u32 16, %s274
        %p276 = scmp.lt.s32.totalorder %s271, 2
        %s277 = scalar_select %p276, %s271, 2
        %s278 = scalar_lea.vmem %s3, %s277
        %p279 = pneg %p127
        %p280 = pneg %p124
        %p281 = pneg %p155
        %p282 = pneg %p152
        %s283 = sand.u32 %s142, 1
        %s284 = scalar_lea.sflag [#allocation4], %s283
        %s285 = sand.u32 %s142, 1
        %s286 = smul.addr %s285, 16
        %s287 = scalar_lea.vmem [#allocation5], %s286
        %s288 = smul.u32 2, %s25
        %s289 = ssub.s32 3, %s288
        %p290 = scmp.lt.s32.totalorder %s289, 2
        %s291 = scalar_select %p290, %s289, 2
        %s292 = smul.u32 128, %s291
        %s293 = smul.u32 2, %s25
        %s294 = ssub.s32 3, %s293
        %p295 = scmp.lt.s32.totalorder %s294, 2
        %s296 = scalar_select %p295, %s294, 2
        %s297 = smul.u32 16, %s296
        %p298 = scmp.lt.s32.totalorder %s293, 2
        %s299 = scalar_select %p298, %s293, 2
        %s300 = scalar_lea.vmem %s2, %s299
        %s301 = smul.u32 2, %s25
        %s302 = ssub.s32 3, %s301
        %p303 = scmp.lt.s32.totalorder %s302, 2
        %s304 = scalar_select %p303, %s302, 2
        %s305 = smul.u32 16, %s304
        %s306 = smul.u32 2, %s25
        %s307 = ssub.s32 3, %s306
        %p308 = scmp.lt.s32.totalorder %s307, 2
        %s309 = scalar_select %p308, %s307, 2
        %s310 = smul.u32 16, %s309
        %p311 = scmp.lt.s32.totalorder %s306, 2
        %s312 = scalar_select %p311, %s306, 2
        %s313 = scalar_lea.vmem %s3, %s312
        %s314 = smul.u32 2, %s25
        %s315 = ssub.s32 3, %s314
        %p316 = scmp.lt.s32.totalorder %s315, 2
        %s317 = scalar_select %p316, %s315, 2
        %s318 = smul.u32 16, %s317
        %s319 = smul.u32 2, %s25
        %s320 = ssub.s32 3, %s319
        %p321 = scmp.lt.s32.totalorder %s320, 2
        %s322 = scalar_select %p321, %s320, 2
        %s323 = smul.u32 128, %s322
        %v324 = vld [vmem:[%s247] sm:$0xff]
        %v325 = vld [vmem:[%s247 + $0x8] sm:$0xff]
        %v326 = vld [vmem:[%s1] sm:$0x1]
        %v328 = vlaneseq
        %v329 = vshrl.u32 %v328, 7
        %v330 = vsub.s32 0, %v329
        %v331 = vrot.slane %v326, %v330
        %v333 = vmul.f32 %v324, %v331
        %v334 = vmul.f32 %v325, %v331
        %vm335 = vcmask 261120
        %v336 = vsel %vm335, %v333, 0.0
        %337 = vadd.xlane.f32.xlu0 %v336
        %v338 = vpop.xlane.xlu0 %337
        %v339 = vsel %vm335, %v334, 0.0
        %340 = vadd.xlane.f32.xlu0 %v339
        %v341 = vpop.xlane.xlu0 %340
        %v342 = vld [vmem:[%s313] sm:$0x1]
        %v343 = vld [vmem:[%s313 + $0x1] sm:$0x1]
        %v344 = vlaneseq
        %v345 = vand.u32 %v344, 127
        %346 = vset.pattern.permute.xlu0 0
        %347 = vperm.xlu0 %346, %v342
        %v348 = vpop.permute.xlu0 %347
        %v349 = vlaneseq
        %v350 = vshrl.u32 %v349, 7
        %v351 = vsub.s32 0, %v350
        %v352 = vrot.slane %v348, %v351
        %353 = vset.pattern.permute.xlu0 0
        %354 = vperm.xlu0 %353, %v343
        %v355 = vpop.permute.xlu0 %354
        %v356 = vlaneseq
        %v357 = vshrl.u32 %v356, 7
        %v358 = vsub.s32 0, %v357
        %v359 = vrot.slane %v355, %v358
        %v360 = vcombine.low %v352, %v359
        %v362 = vunpack.c.l.s4 1966171168
        %v363 = vunpack.c.0.s8 %v362
        %v364 = vlaneseq
        %v365 = vshrl.u32 %v364, 7
        %v366 = vsub.s32 %v363, %v365
        %v367 = vrot.slane %v360, %v366
        %v369 = vunpack.c.l.s4 1966171168
        %v370 = vunpack.c.0.s8 %v369
        %v371 = vlaneseq
        %v372 = vshrl.u32 %v371, 7
        %v373 = vsub.s32 %v370, %v372
        %v374 = vrot.slane %v367, %v373
        %vm375 = vcmp.lt.s32.totalorder %v345, %v374
        %v378 = vlaneseq
        %v379 = vshrl.u32 %v378, 7
        %v380 = vsub.s32 %v345, %v379
        %v381 = vrot.slane %v338, %v380
        %v382 = vlaneseq
        %v383 = vshrl.u32 %v382, 7
        %v384 = vsub.s32 %v345, %v383
        %v385 = vrot.slane %v341, %v384
        %vm386 = vcmask 1041409
        %v387 = vsel %vm386, %v385, %v381
        %v389 = vsel %vm375, %v387, -inf
        %vm390 = vcmask 58368
        %v391 = vsel %vm390, %v389, -inf
        %392 = vmax.xlane.f32.xlu0 %v391
        %v393 = vpop.xlane.xlu0 %392
        %vm394 = vweird.f32 %v393
        %vm395 = vmxor %vm394, 1
        %v396 = vsel %vm395, %v393, 0.0
        %v397 = vsub.f32 %v389, %v396
        %v398 = vmul.f32 %v397, 1.442695
        %v399 = vpow.pop %v398
        %v400 = vsel %vm375, %v399, 0.0
        %v401 = vsel %vm390, %v400, 0.0
        %402 = vadd.xlane.f32.xlu0 %v401
        %v403 = vpop.xlane.xlu0 %402
        %vm404 = vcmp.gt.f32.partialorder %v403, 0.0
        %v405 = vsel %vm404, %v403, 1.0
        %v406 = vrcp.pop %v405
        %v407 = vmul.f32 %v400, %v406
        %v408 = vlaneseq
        %v409 = vshrl.u32 %v408, 7
        %v410 = vsub.s32 0, %v409
        %v411 = vrot.slane %v407, %v410
        %413 = vbcast.lane.b32.xlu0 %v411, 256
        %v414 = vpop.permute.xlu0 %413
        %v415 = vlaneseq
        %v416 = vshrl.u32 %v415, 7
        %v417 = vsub.s32 1, %v416
        %v418 = vrot.slane %v407, %v417
        %420 = vbcast.lane.b32.xlu0 %v418, 256
        %v421 = vpop.permute.xlu0 %420
        %v422 = vmul.f32 %v414, %v324
        %v423 = vmul.f32 %v421, %v325
        %v424 = vsel %vm335, %v422, 0.0
        %v425 = vrot.slane %v424, 4
        %v426 = vadd.f32 %v424, %v425
        %v427 = vrot.slane %v426, 2
        %v428 = vadd.f32 %v426, %v427
        %v429 = vrot.slane %v428, 1
        %v430 = vadd.f32 %v428, %v429
        %v431 = vsel %vm335, %v423, 0.0
        %v432 = vrot.slane %v431, 4
        %v433 = vadd.f32 %v431, %v432
        %v434 = vrot.slane %v433, 2
        %v435 = vadd.f32 %v433, %v434
        %v436 = vrot.slane %v435, 1
        %v437 = vadd.f32 %v435, %v436
        %v438 = vld [vmem:[%s300] sm:$0x1]
        %v439 = vld [vmem:[%s300 + $0x1] sm:$0x1]
        %s440 = smul.u32 %s26, 8
        %v441 = vlaneseq
        %v442 = vshrl.u32 %v441, 7
        %v443 = vstv %s440
        %v444 = vadd.s32 %v443, %v442
        %v445 = vlaneseq
        %v446 = vshrl.u32 %v445, 7
        %v447 = vsub.s32 0, %v446
        %v448 = vrot.slane %v438, %v447
        %v449 = vlaneseq
        %v450 = vshrl.u32 %v449, 7
        %v451 = vsub.s32 0, %v450
        %v452 = vrot.slane %v439, %v451
        %vm453 = vcmp.lt.s32.totalorder %v444, %v448
        %vm454 = vcmp.lt.s32.totalorder %v444, %v452
        %v455 = vsel %vm453, 1, 0
        %v456 = vsel %vm454, 1, 0
        %457 = vset.pattern.permute.xlu0 0
        %458 = vperm.xlu0 %457, %v455
        %v459 = vpop.permute.xlu0 %458
        %460 = vset.pattern.permute.xlu0 0
        %461 = vperm.xlu0 %460, %v456
        %v462 = vpop.permute.xlu0 %461
        %vm463 = vcmp.eq.s32.totalorder %v459, 1
        %vm464 = vcmp.eq.s32.totalorder %v462, 1
        %v465 = vsel %vm463, %v430, 0.0
        %v466 = vsel %vm464, %v437, 0.0
        %467 = vst.msk [vmem:[%s287] sm:$0xff] %vm335, %v465
        %468 = vst.msk [vmem:[%s287 + $0x8] sm:$0xff] %vm335, %v466
        %s469 = sand.u32 %s142, 1
        %s470 = scalar_lea.sflag [#allocation4], %s469
        %s471 = sand.u32 %s142, 1
        %s472 = smul.addr %s471, 16
        %s473 = scalar_lea.vmem [#allocation5], %s472
        // Predicated region
        $region41: #{tpu_custom_call.1} parent=35 // pred_check
          %p474 = pneg %p152
        $region42: #{tpu_custom_call.1} parent=35 // pred_check_branch
          %476 = sbr.rel (%p474) target = $region44
        $region43: #{tpu_custom_call.1} parent=35 // pred_region
          %s477 = smul.u32 2, %s25
          %s478 = ssub.s32 3, %s477
          %p479 = scmp.lt.s32.totalorder %s478, 2
          %s480 = scalar_select %p479, %s478, 2
          %s481 = smul.u32 128, %s480
          %s483 = ssub.s32 256, %s481
          %484 = vsyncadd %s470, %s483
          %p485 = scmp.ne.s32.totalorder 0, %s481
          %s486 = sadd.s32 %s26, %s477
          %s487 = smul.addr %s486, 128
          %s488 = scalar_lea.hbm %s4, %s487
          %s489 = smul.u32 8, %s480
          %s490 = sshll.u32 %s473, 4
          %s491 = int_to_ptr.vmem [resolvable:$true] %s490
          %s492 = sshll.u32 %s489, 4
          %496 = dma.vmem_to_hbm [thread:$0]  (%p485), %s491, %s492, %s488, %s470, 128, 128, 8
        $region44: #{tpu_custom_call.1} parent=35 // pred_fallthru
          _
      $region36: #{tpu_custom_call.1} parent=5 // pred_fallthru
        _
      %p497 = scmp.le.s32.totalorder 2, %s16
      // Predicated region
      $region45: #{tpu_custom_call.1} parent=5 // pred_check
        %p498 = pneg %p497
      $region46: #{tpu_custom_call.1} parent=5 // pred_check_branch
        %500 = sbr.rel (%p498) target = $region48
      $region47: #{tpu_custom_call.1} parent=5 // pred_region
        %s501 = ssub.s32 %s16, 2
        // Predicated region
        $region49: #{tpu_custom_call.1} parent=47 // pred_check
          %p502 = pneg %p158
        $region50: #{tpu_custom_call.1} parent=47 // pred_check_branch
          %504 = sbr.rel (%p502) target = $region52
        $region51: #{tpu_custom_call.1} parent=47 // pred_region
          %s505 = sand.u32 %s143, 1
          %s506 = scalar_lea.sflag [#allocation4], %s505
          %s507 = sand.u32 %s143, 1
          %s508 = smul.addr %s507, 16
          %s509 = scalar_lea.vmem [#allocation5], %s508
          %510 = dma.done %s506, 256
        $region52: #{tpu_custom_call.1} parent=47 // pred_fallthru
          _
      $region48: #{tpu_custom_call.1} parent=5 // pred_fallthru
        _
    $region6: #{tpu_custom_call.1} parent=1 // loop_footer
      %s20 = sadd.s32 1, %s16
    $region7: #{tpu_custom_call.1} parent=1 // loop_footer_branch
      %15 = sbr.rel target = $region3
    $region8: #{tpu_custom_call.1} parent=1 // loop_exit
      _
    %511 = vsyncpa [#allocation3], 1
    %s512 = scalar_lea.sflag [#allocation3], 1
    %513 = vsyncpa %s512, 1
    %514 = vsyncpa [#allocation4], 1
    %s515 = scalar_lea.sflag [#allocation4], 1
    %516 = vsyncpa %s515, 1

</llo_original>
